<compile_context>
chip_gen: v6e
topology: v6e:2x2x1
jax: 0.10.0
libtpu: 0.0.40
codegen_flags: <defaults>
</compile_context>

<pallas_src>
import jax
import jax.numpy as jnp
from jax.experimental import pallas as pl
from jax.experimental.pallas import tpu as pltpu

LANE = 128                        # TPU lane width (last dim)
TARGET_BLOCK_BYTES = 4 << 20      # ~4 MiB/block; in+out double-buffered -> 16 MiB scoped VMEM
VMEM_LIMIT_BYTES = 32 << 20       # safe on v5e/v6e/v7x (<= scoped default or phys with headroom)
RAGGED_TILE_ELEMS = 128 * 1024    # 1-D fallback tile (multiple of 32*128, packs for every dtype)


def _square_kernel(x_ref, o_ref):
    x = x_ref[...]
    o_ref[...] = x * x


def _round_up(a: int, b: int) -> int:
    return pl.cdiv(a, b) * b


def act_square(x: jax.Array, *, donate: bool = False) -> jax.Array:
    """Elementwise square, equivalent to torch.square(x)."""
    orig_shape = x.shape
    dtype = x.dtype
    n = x.size
    if n == 0:
        return x

    itemsize = jnp.dtype(dtype).itemsize
    # Packed sublane count: 8 for 32-bit, 16 for 16-bit, 32 for 8-bit dtypes.
    sublane = 8 * max(1, 4 // itemsize)

    aliases = {0: 0} if donate else {}
    cost = pl.CostEstimate(flops=n, transcendentals=0, bytes_accessed=2 * n * itemsize)

    # ---- Common path: widest lane-dense column count that divides n exactly.
    cols = None
    for c in (8 * LANE, 4 * LANE, 2 * LANE, LANE):
        if n % c == 0:
            cols = c
            break

    if cols is not None:
        rows = n // cols
        x2d = jnp.reshape(x, (rows, cols))

        # Block rows sized for ~TARGET_BLOCK_BYTES, rounded to the packed
        # sublane multiple.
        target_rows = max(sublane, (TARGET_BLOCK_BYTES // (cols * itemsize)) // sublane * sublane)
        # v7x megacore: make sure the (parallel) grid has >= 2 steps whenever
        # the row count allows it, so both TensorCores get work.
        half_rows = _round_up(pl.cdiv(rows, 2), sublane)
        tile_rows = min(target_rows, half_rows)

        grid = (pl.cdiv(rows, tile_rows),)   # partial final block masked by Pallas

        out2d = pl.pallas_call(
            _square_kernel,
            out_shape=jax.ShapeDtypeStruct((rows, cols), dtype),
            grid_spec=pltpu.PrefetchScalarGridSpec(
                num_scalar_prefetch=0,
                grid=grid,
                in_specs=[pl.BlockSpec((tile_rows, cols), lambda i: (i, 0))],
                out_specs=pl.BlockSpec((tile_rows, cols), lambda i: (i, 0)),
            ),
            compiler_params=pltpu.CompilerParams(
                dimension_semantics=("parallel",),
                vmem_limit_bytes=VMEM_LIMIT_BYTES,
            ),
            cost_estimate=cost,
            input_output_aliases=aliases,
        )(x2d)
        return jnp.reshape(out2d, orig_shape)

    # ---- Ragged path (n % 128 != 0): no pad / slice, zero extra HBM passes.
    x_flat = jnp.reshape(x, (n,))

    if n <= RAGGED_TILE_ELEMS:
        # Small ragged input: single whole-array block in VMEM.
        out_flat = pl.pallas_call(
            _square_kernel,
            out_shape=jax.ShapeDtypeStruct((n,), dtype),
            compiler_params=pltpu.CompilerParams(vmem_limit_bytes=VMEM_LIMIT_BYTES),
            cost_estimate=cost,
            input_output_aliases=aliases,
        )(x_flat)
    else:
        # Large ragged input: 1-D grid with lane-multiple tiles; Pallas masks
        # the partial final block.
        tile = RAGGED_TILE_ELEMS
        out_flat = pl.pallas_call(
            _square_kernel,
            out_shape=jax.ShapeDtypeStruct((n,), dtype),
            grid_spec=pltpu.PrefetchScalarGridSpec(
                num_scalar_prefetch=0,
                grid=(pl.cdiv(n, tile),),
                in_specs=[pl.BlockSpec((tile,), lambda i: (i,))],
                out_specs=pl.BlockSpec((tile,), lambda i: (i,)),
            ),
            compiler_params=pltpu.CompilerParams(
                dimension_semantics=("parallel",),
                vmem_limit_bytes=VMEM_LIMIT_BYTES,
            ),
            cost_estimate=cost,
            input_output_aliases=aliases,
        )(x_flat)

    return jnp.reshape(out_flat, orig_shape)


if __name__ == "__main__":
    key = jax.random.PRNGKey(0)

    # Small NCHW input consistent with the module's usage: (batch, channels, H, W).
    x = jax.random.normal(key, (2, 4, 16, 16), dtype=jnp.float32)
    out = jax.block_until_ready(act_square(x))
    assert out.shape == x.shape and out.dtype == x.dtype
    assert jnp.array_equal(out, jnp.square(x))

    # Ragged-size path (size not a multiple of 128): zero-copy 1-D single block.
    x2 = jax.random.normal(jax.random.PRNGKey(1), (2, 3, 5, 7), dtype=jnp.float32)
    out2 = jax.block_until_ready(act_square(x2))
    assert jnp.array_equal(out2, jnp.square(x2))

    # bf16 path (packed-sublane tiling).
    x3 = jax.random.normal(jax.random.PRNGKey(2), (2, 4, 16, 16), dtype=jnp.bfloat16)
    out3 = jax.block_until_ready(act_square(x3))
    assert jnp.array_equal(out3, jnp.square(x3))

    # Multi-step grid path (rows split so a v7x megacore gets >= 2 steps).
    x4 = jax.random.normal(jax.random.PRNGKey(3), (4, 16, 32, 32), dtype=jnp.float32)
    out4 = jax.block_until_ready(act_square(x4))
    assert jnp.array_equal(out4, jnp.square(x4))

    print("KERNEL_OK")
</pallas_src>

<mosaic_0001>
module attributes {stable_mosaic.version = 11 : i64} {
  func.func @_square_kernel(%arg0: i32, %arg1: memref<8x1024xf32, #tpu.memory_space<vmem>>, %arg2: memref<8x1024xf32, #tpu.memory_space<vmem>>) attributes {dimension_semantics = [#tpu.dimension_semantics<parallel>], iteration_bounds = array<i64: 1>, scalar_prefetch = 0 : i64, scratch_operands = 0 : i64, tpu.core_type = #tpu.core_type<tc>, window_params = [{transform_indices = @transform_0, window_bounds = array<i64: 8, 1024>}, {transform_indices = @transform_1, window_bounds = array<i64: 8, 1024>}]} {
    %c0 = arith.constant 0 : index
    %c0_0 = arith.constant 0 : index
    %0 = vector.load %arg1[%c0, %c0_0] : memref<8x1024xf32, #tpu.memory_space<vmem>>, vector<8x1024xf32>
    %1 = arith.mulf %0, %0 : vector<8x1024xf32>
    %c0_1 = arith.constant 0 : index
    %c0_2 = arith.constant 0 : index
    %2 = vector.load %arg2[%c0_1, %c0_2] : memref<8x1024xf32, #tpu.memory_space<vmem>>, vector<8x1024xf32>
    tpu.vector_store %arg2[%c0_1, %c0_2], %1 {strides = array<i32>} : memref<8x1024xf32, #tpu.memory_space<vmem>>, vector<8x1024xf32>,
    return
  }
  func.func @transform_0(%arg0: i32) -> (i32, i32) {
    %c0_i32 = arith.constant 0 : i32
    %c0_i32_0 = arith.constant 0 : i32
    return %arg0, %c0_i32 : i32, i32
  }
  func.func @transform_1(%arg0: i32) -> (i32, i32) {
    %c0_i32 = arith.constant 0 : i32
    %c0_i32_0 = arith.constant 0 : i32
    return %arg0, %c0_i32 : i32, i32
  }
}

</mosaic_0001>

<llo_original>
// kernel: tpu_custom_call.1
$region0: #{tpu_custom_call.1}
  #allocation0 [shape = 'u32[]', space=smem, size = 0x4, offset = 0x4, fixed_abs, tag = 'smem constant byte address 0x4 - core index']
  #allocation1 [shape = 'u32[144,128]{1,0:T(1,128)}', space=vmem, size = 0x12000, scoped, tag = 'internal scratch']
  %s0 = inlined_call_operand.hbm [shape: f32[2,1024], index: 0, kind: input, shape index: {}]
  %s1 = inlined_call_operand.hbm [shape: f32[2,1024], index: 1, kind: output, shape index: {}]
  %s2 = sld [smem:[#allocation0]]
  $region18: #{tpu_custom_call.1} parent=0
    _
  %s4 = ssub.s32 1, %s2
  %s5 = scalar_select 0, %s4, %s2
  $region1: #{tpu_custom_call.1} parent=0
    #allocation2 [shape = 'u8[32768]{0}', space=vmem, size = 0x8000, scoped, tag = 'input window, operand 0, single buffered']
    #allocation3 [shape = 's32[1]{0}', space=sflag, size = 0x4, scoped, tag = 'scoped memory for tpu_custom_call.1']
    #allocation4 [shape = 's32[1]{0}', space=sflag, size = 0x4, scoped, tag = 'scoped memory for tpu_custom_call.1']
    #allocation5 [shape = 'u8[32768]{0}', space=vmem, size = 0x8000, scoped, tag = 'output window, operand 0, single buffered']
    %6 = vsyncpa [#allocation3], 0
    %7 = vsyncpa [#allocation4], 0
    // Predicated region
    $region2: #{tpu_custom_call.1} parent=1 // pred_check
      _
    $region3: #{tpu_custom_call.1} parent=1 // pred_check_branch
      %9 = sbr.rel (0) target = $region5
    $region4: #{tpu_custom_call.1} parent=1 // pred_region
      %s11 = ssub.s32 1024, 256
      %12 = vsyncadd [#allocation3], %s11
      %s13 = sshll.u32 [#allocation2], 4
      %s14 = int_to_ptr.vmem [resolvable:$true] %s13
      %19 = dma.hbm_to_vmem [thread:$0]  %s0, 256, %s14, [#allocation3], 256, 256, 16
    $region5: #{tpu_custom_call.1} parent=1 // pred_fallthru
      _
    // Predicated region
    $region6: #{tpu_custom_call.1} parent=1 // pred_check
      _
    $region7: #{tpu_custom_call.1} parent=1 // pred_check_branch
      %21 = sbr.rel (0) target = $region9
    $region8: #{tpu_custom_call.1} parent=1 // pred_region
      %22 = dma.done [#allocation3], 1024
    $region9: #{tpu_custom_call.1} parent=1 // pred_fallthru
      _
    %v23 = vld [vmem:[#allocation2] sm:$0xff]
    %v24 = vld [vmem:[#allocation2 + $0x8] sm:$0xff]
    %v25 = vld [vmem:[#allocation2 + $0x10] sm:$0xff]
    %v26 = vld [vmem:[#allocation2 + $0x18] sm:$0xff]
    %v27 = vld [vmem:[#allocation2 + $0x20] sm:$0xff]
    %v28 = vld [vmem:[#allocation2 + $0x28] sm:$0xff]
    %v29 = vld [vmem:[#allocation2 + $0x30] sm:$0xff]
    %v30 = vld [vmem:[#allocation2 + $0x38] sm:$0xff]
    %v31 = vmul.f32 %v23, %v23
    %v32 = vmul.f32 %v24, %v24
    %v33 = vmul.f32 %v25, %v25
    %v34 = vmul.f32 %v26, %v26
    %v35 = vmul.f32 %v27, %v27
    %v36 = vmul.f32 %v28, %v28
    %v37 = vmul.f32 %v29, %v29
    %v38 = vmul.f32 %v30, %v30
    %39 = vst [vmem:[#allocation5] sm:$0xff] %v31
    %40 = vst [vmem:[#allocation5 + $0x8] sm:$0xff] %v32
    %41 = vst [vmem:[#allocation5 + $0x10] sm:$0xff] %v33
    %42 = vst [vmem:[#allocation5 + $0x18] sm:$0xff] %v34
    %43 = vst [vmem:[#allocation5 + $0x20] sm:$0xff] %v35
    %44 = vst [vmem:[#allocation5 + $0x28] sm:$0xff] %v36
    %45 = vst [vmem:[#allocation5 + $0x30] sm:$0xff] %v37
    %46 = vst [vmem:[#allocation5 + $0x38] sm:$0xff] %v38
    // Predicated region
    $region10: #{tpu_custom_call.1} parent=1 // pred_check
      _
    $region11: #{tpu_custom_call.1} parent=1 // pred_check_branch
      %48 = sbr.rel (0) target = $region13
    $region12: #{tpu_custom_call.1} parent=1 // pred_region
      %s50 = ssub.s32 1024, 256
      %51 = vsyncadd [#allocation4], %s50
      %s52 = sshll.u32 [#allocation5], 4
      %s53 = int_to_ptr.vmem [resolvable:$true] %s52
      %58 = dma.vmem_to_hbm [thread:$0]  %s53, 256, %s1, [#allocation4], 256, 256, 16
    $region13: #{tpu_custom_call.1} parent=1 // pred_fallthru
      _
    // Predicated region
    $region14: #{tpu_custom_call.1} parent=1 // pred_check
      _
    $region15: #{tpu_custom_call.1} parent=1 // pred_check_branch
      %60 = sbr.rel (0) target = $region17
    $region16: #{tpu_custom_call.1} parent=1 // pred_region
      %61 = dma.done [#allocation4], 1024
    $region17: #{tpu_custom_call.1} parent=1 // pred_fallthru
      _
    %62 = vsyncpa [#allocation3], 1
    %63 = vsyncpa [#allocation4], 1

</llo_original>
